<compile_context>
chip_gen: v7x
topology: tpu7x:2x2x1
jax: 0.10.0
libtpu: 0.0.40
codegen_flags: <defaults>
</compile_context>

<pallas_src>
import functools

import jax
import jax.numpy as jnp
from jax import lax
from jax.experimental import pallas as pl
from jax.experimental.pallas import tpu as pltpu

_LANE = 128      # vreg lane width (last dim)
_SUBLANE = 8     # vreg sublane width for f32 (second-to-last dim)
_UNROLL_MAX = 8  # fully unroll the hidden stack only while it is small


def _round_up(n, m):
    return ((n + m - 1) // m) * m


def _pick_batch_tile(Bp):
    # Prefer MXU-filling batch tiles when the (padded) batch allows it.
    for t in (512, 256, 128):
        if Bp % t == 0:
            return t
    return Bp


# ----------------------------------------------------------------------------
# Fused kernel: x -> ReLU(x @ W1 + b1) -> [ReLU(. @ Wh_i + bh_i)]*L -> . @ Wo + bo
# Weights are pre-transposed to (In, Out) and zero-padded to lane multiples.
# The hidden activation `h` is a plain value (vreg-resident), never stored.
# ----------------------------------------------------------------------------
def _fused_mlp_kernel(x_ref, w1_ref, b1_ref, wh_ref, bh_ref, wo_ref, bo_ref,
                      o_ref, *, n_hidden: int):
    dt = w1_ref.dtype  # compute dtype of the MXU operands (f32 or bf16)

    # fc1 + ReLU (f32 MXU accumulate, f32 epilogue on the VPU).
    x = x_ref[...].astype(dt)
    h = jnp.maximum(
        jnp.dot(x, w1_ref[...], preferred_element_type=jnp.float32) + b1_ref[...],
        0.0)

    def layer(i, h):
        y = jnp.dot(h.astype(dt), wh_ref[i], preferred_element_type=jnp.float32)
        return jnp.maximum(y + bh_ref[i], 0.0)

    if n_hidden <= _UNROLL_MAX:
        # Small static depth: unroll (LLO scheduler sees everything).
        for i in range(n_hidden):
            h = layer(i, h)
    else:
        # Deep stack: bound live ranges / code size with a real loop.
        h = lax.fori_loop(0, n_hidden, layer, h)

    # Output layer, no activation.
    y = jnp.dot(h.astype(dt), wo_ref[...], preferred_element_type=jnp.float32)
    o_ref[...] = (y + bo_ref[...]).astype(o_ref.dtype)


def _fused_mlp_call(xp, w1p, b1p, whp, bhp, wop, bop, *, batch_tile):
    Bp, InP = xp.shape
    Hp = w1p.shape[1]
    Cp = wop.shape[1]
    L = whp.shape[0]
    tm = batch_tile
    grid = (Bp // tm,)

    kernel = functools.partial(_fused_mlp_kernel, n_hidden=L)

    # Scheduler hints for XLA (advisory).
    flops = 2 * Bp * (InP * Hp + L * Hp * Hp + Hp * Cp)
    bytes_accessed = sum(int(a.size * a.dtype.itemsize)
                         for a in (xp, w1p, b1p, whp, bhp, wop, bop))
    bytes_accessed += int(Bp * Cp * 4)

    # VMEM budget: all weights resident + double-buffered x/out tiles + slack.
    weight_bytes = sum(int(a.size * a.dtype.itemsize)
                       for a in (w1p, b1p, whp, bhp, wop, bop))
    act_bytes = tm * (InP + Hp + Cp) * 4
    vmem_needed = weight_bytes + 4 * act_bytes
    vmem_limit = int(min(64 * 1024 * 1024, max(32 * 1024 * 1024, 2 * vmem_needed)))

    return pl.pallas_call(
        kernel,
        out_shape=jax.ShapeDtypeStruct((Bp, Cp), jnp.float32),
        grid=grid,
        in_specs=[
            pl.BlockSpec((tm, InP), lambda i: (i, 0)),      # x: tiled on batch
            pl.BlockSpec((InP, Hp), lambda i: (0, 0)),      # w1: resident
            pl.BlockSpec((1, Hp), lambda i: (0, 0)),        # b1: resident
            pl.BlockSpec((L, Hp, Hp), lambda i: (0, 0, 0)),  # hidden weights
            pl.BlockSpec((L, 1, Hp), lambda i: (0, 0, 0)),   # hidden biases
            pl.BlockSpec((Hp, Cp), lambda i: (0, 0)),       # wo: resident
            pl.BlockSpec((1, Cp), lambda i: (0, 0)),        # bo: resident
        ],
        out_specs=pl.BlockSpec((tm, Cp), lambda i: (i, 0)),
        compiler_params=pltpu.CompilerParams(
            dimension_semantics=("parallel",),
            vmem_limit_bytes=vmem_limit),
        cost_estimate=pl.CostEstimate(
            flops=flops, transcendentals=0, bytes_accessed=bytes_accessed),
    )(xp, w1p, b1p, whp, bhp, wop, bop)


# ----------------------------------------------------------------------------
# Parameter handling (torch layout in, kernel layout out).  pack_mlp_params is
# meant to run ONCE (when params change), not inside the per-call forward.
# ----------------------------------------------------------------------------
def init_mlp_params(key, in_features, nb_classes, nb_hidden_layer, hidden_size):
    """Torch-style params: W is (out_features, in_features), b is (out_features,)."""
    n_fcs = max(1, nb_hidden_layer)  # torch ModuleList always holds >= 1 layer
    dims = [(in_features, hidden_size)]
    dims += [(hidden_size, hidden_size)] * n_fcs
    dims += [(hidden_size, nb_classes)]
    params = []
    for fan_in, fan_out in dims:
        key, kw, kb = jax.random.split(key, 3)
        bound = 1.0 / float(fan_in) ** 0.5
        w = jax.random.uniform(kw, (fan_out, fan_in), jnp.float32, -bound, bound)
        b = jax.random.uniform(kb, (fan_out,), jnp.float32, -bound, bound)
        params.append((w, b))
    return params


def pack_mlp_params(params, compute_dtype=jnp.float32):
    """Pre-transpose to (In, Out), pad feature dims to 128 lanes, stack hidden
    layers.  Weights are cast to `compute_dtype` (use bf16 at production sizes
    for ~2x MXU throughput and half the VMEM); biases stay f32."""
    (w1, b1) = params[0]
    hidden = params[1:-1]
    (wo, bo) = params[-1]
    assert len(hidden) >= 1, "torch MLP always has >=1 layer in self.fcs"

    In = w1.shape[1]
    H = w1.shape[0]
    C = wo.shape[0]
    InP = _round_up(In, _LANE)
    Hp = _round_up(H, _LANE)
    Cp = _round_up(C, _LANE)

    def pad_t(w, rows_p, cols_p):
        wt = w.T  # (out, in) -> (in, out); done once, outside the kernel
        wt = jnp.pad(wt, ((0, rows_p - wt.shape[0]), (0, cols_p - wt.shape[1])))
        return wt.astype(compute_dtype)

    def pad_b(b, cols_p):
        return jnp.pad(b.reshape(1, -1), ((0, 0), (0, cols_p - b.shape[0])))

    w1p = pad_t(w1, InP, Hp)
    b1p = pad_b(b1, Hp)
    whp = jnp.stack([pad_t(w, Hp, Hp) for (w, _) in hidden])   # (L, Hp, Hp)
    bhp = jnp.stack([pad_b(b, Hp) for (_, b) in hidden])       # (L, 1, Hp)
    wop = pad_t(wo, Hp, Cp)
    bop = pad_b(bo, Cp)

    packed = (w1p, b1p, whp, bhp, wop, bop)
    meta = {"in_features": In, "nb_classes": C}
    return packed, meta


def mlp_forward(packed, x, *, nb_classes):
    """Forward matching torch MLP.forward.  `packed` comes from pack_mlp_params
    (computed once outside this jitted function)."""
    B, In = x.shape
    InP = packed[0].shape[0]
    Bp = _round_up(max(B, _SUBLANE), _SUBLANE)
    tm = _pick_batch_tile(Bp)
    xp = jnp.pad(x, ((0, Bp - B), (0, InP - In)))
    out = _fused_mlp_call(xp, *packed, batch_tile=tm)
    return out[:B, :nb_classes]


if __name__ == "__main__":
    in_features = 32
    hidden_size = 64
    nb_classes = 16
    nb_hidden_layer = 2
    batch = 8

    key = jax.random.PRNGKey(0)
    key_x, key_p = jax.random.split(key)
    x = jax.random.normal(key_x, (batch, in_features), jnp.float32)
    params = init_mlp_params(key_p, in_features, nb_classes,
                             nb_hidden_layer, hidden_size)

    # Pack ONCE (hoisted out of the per-call forward path).
    packed, meta = pack_mlp_params(params, compute_dtype=jnp.float32)
    packed = jax.block_until_ready(packed)

    fwd = jax.jit(functools.partial(mlp_forward, nb_classes=meta["nb_classes"]))
    out = jax.block_until_ready(fwd(packed, x))
    assert out.shape == (batch, nb_classes)

    # Reference in plain JAX (torch-layout math: y = x @ W.T + b).
    ref = jnp.maximum(x @ params[0][0].T + params[0][1], 0.0)
    for (w, b) in params[1:-1]:
        ref = jnp.maximum(ref @ w.T + b, 0.0)
    ref = ref @ params[-1][0].T + params[-1][1]
    assert jnp.allclose(out, ref, atol=1e-5, rtol=1e-5)

    print("KERNEL_OK")
</pallas_src>

<mosaic_0001>
module attributes {stable_mosaic.version = 11 : i64} {
  func.func @_fused_mlp_kernel(%arg0: i32, %arg1: memref<8x128xf32, #tpu.memory_space<vmem>>, %arg2: memref<128x128xf32, #tpu.memory_space<vmem>>, %arg3: memref<1x128xf32, #tpu.memory_space<vmem>>, %arg4: memref<2x128x128xf32, #tpu.memory_space<vmem>>, %arg5: memref<2x1x128xf32, #tpu.memory_space<vmem>>, %arg6: memref<128x128xf32, #tpu.memory_space<vmem>>, %arg7: memref<1x128xf32, #tpu.memory_space<vmem>>, %arg8: memref<8x128xf32, #tpu.memory_space<vmem>>) attributes {dimension_semantics = [#tpu.dimension_semantics<parallel>], iteration_bounds = array<i64: 1>, scalar_prefetch = 0 : i64, scratch_operands = 0 : i64, tpu.core_type = #tpu.core_type<tc>, window_params = [{transform_indices = @transform_0, window_bounds = array<i64: 8, 128>}, {pipeline_mode = #tpu.pipeline_mode<synchronous>, transform_indices = @transform_1, window_bounds = array<i64: 128, 128>}, {pipeline_mode = #tpu.pipeline_mode<synchronous>, transform_indices = @transform_2, window_bounds = array<i64: 1, 128>}, {pipeline_mode = #tpu.pipeline_mode<synchronous>, transform_indices = @transform_3, window_bounds = array<i64: 2, 128, 128>}, {pipeline_mode = #tpu.pipeline_mode<synchronous>, transform_indices = @transform_4, window_bounds = array<i64: 2, 1, 128>}, {pipeline_mode = #tpu.pipeline_mode<synchronous>, transform_indices = @transform_5, window_bounds = array<i64: 128, 128>}, {pipeline_mode = #tpu.pipeline_mode<synchronous>, transform_indices = @transform_6, window_bounds = array<i64: 1, 128>}, {transform_indices = @transform_7, window_bounds = array<i64: 8, 128>}]} {
    %c0 = arith.constant 0 : index
    %c0_0 = arith.constant 0 : index
    %0 = vector.load %arg1[%c0, %c0_0] : memref<8x128xf32, #tpu.memory_space<vmem>>, vector<8x128xf32>
    %c0_1 = arith.constant 0 : index
    %c0_2 = arith.constant 0 : index
    %1 = vector.load %arg2[%c0_1, %c0_2] : memref<128x128xf32, #tpu.memory_space<vmem>>, vector<128x128xf32>
    %cst = arith.constant dense<0.000000e+00> : vector<8x128xf32>
    %2 = tpu.matmul %0, %1, %cst {dimension_numbers = #tpu.dot_dimension_numbers<[1], [0], [0], [1], [0, 0, 1, 1], [], []>} : vector<8x128xf32>, vector<128x128xf32>, vector<8x128xf32> -> vector<8x128xf32>
    %c0_3 = arith.constant 0 : index
    %c0_4 = arith.constant 0 : index
    %3 = vector.load %arg3[%c0_3, %c0_4] : memref<1x128xf32, #tpu.memory_space<vmem>>, vector<1x128xf32>
    %4 = vector.broadcast %3 : vector<1x128xf32> to vector<8x128xf32>
    %5 = arith.addf %2, %4 : vector<8x128xf32>
    %cst_5 = arith.constant 0.000000e+00 : f32
    %6 = vector.broadcast %cst_5 : f32 to vector<8x128xf32>
    %7 = arith.maximumf %5, %6 : vector<8x128xf32>
    %c0_6 = arith.constant 0 : index
    %c0_7 = arith.constant 0 : index
    %c0_8 = arith.constant 0 : index
    %8 = vector.load %arg4[%c0_6, %c0_7, %c0_8] : memref<2x128x128xf32, #tpu.memory_space<vmem>>, vector<1x128x128xf32>
    %9 = vector.shape_cast %8 : vector<1x128x128xf32> to vector<128x128xf32>
    %cst_9 = arith.constant dense<0.000000e+00> : vector<8x128xf32>
    %10 = tpu.matmul %7, %9, %cst_9 {dimension_numbers = #tpu.dot_dimension_numbers<[1], [0], [0], [1], [0, 0, 1, 1], [], []>} : vector<8x128xf32>, vector<128x128xf32>, vector<8x128xf32> -> vector<8x128xf32>
    %c0_10 = arith.constant 0 : index
    %c0_11 = arith.constant 0 : index
    %c0_12 = arith.constant 0 : index
    %11 = vector.load %arg5[%c0_10, %c0_11, %c0_12] : memref<2x1x128xf32, #tpu.memory_space<vmem>>, vector<1x1x128xf32>
    %12 = vector.shape_cast %11 : vector<1x1x128xf32> to vector<1x128xf32>
    %13 = vector.broadcast %12 : vector<1x128xf32> to vector<8x128xf32>
    %14 = arith.addf %10, %13 : vector<8x128xf32>
    %cst_13 = arith.constant 0.000000e+00 : f32
    %15 = vector.broadcast %cst_13 : f32 to vector<8x128xf32>
    %16 = arith.maximumf %14, %15 : vector<8x128xf32>
    %c1 = arith.constant 1 : index
    %c0_14 = arith.constant 0 : index
    %c0_15 = arith.constant 0 : index
    %17 = vector.load %arg4[%c1, %c0_14, %c0_15] : memref<2x128x128xf32, #tpu.memory_space<vmem>>, vector<1x128x128xf32>
    %18 = vector.shape_cast %17 : vector<1x128x128xf32> to vector<128x128xf32>
    %cst_16 = arith.constant dense<0.000000e+00> : vector<8x128xf32>
    %19 = tpu.matmul %16, %18, %cst_16 {dimension_numbers = #tpu.dot_dimension_numbers<[1], [0], [0], [1], [0, 0, 1, 1], [], []>} : vector<8x128xf32>, vector<128x128xf32>, vector<8x128xf32> -> vector<8x128xf32>
    %c1_17 = arith.constant 1 : index
    %c0_18 = arith.constant 0 : index
    %c0_19 = arith.constant 0 : index
    %20 = vector.load %arg5[%c1_17, %c0_18, %c0_19] : memref<2x1x128xf32, #tpu.memory_space<vmem>>, vector<1x1x128xf32>
    %21 = vector.shape_cast %20 : vector<1x1x128xf32> to vector<1x128xf32>
    %22 = vector.broadcast %21 : vector<1x128xf32> to vector<8x128xf32>
    %23 = arith.addf %19, %22 : vector<8x128xf32>
    %cst_20 = arith.constant 0.000000e+00 : f32
    %24 = vector.broadcast %cst_20 : f32 to vector<8x128xf32>
    %25 = arith.maximumf %23, %24 : vector<8x128xf32>
    %c0_21 = arith.constant 0 : index
    %c0_22 = arith.constant 0 : index
    %26 = vector.load %arg6[%c0_21, %c0_22] : memref<128x128xf32, #tpu.memory_space<vmem>>, vector<128x128xf32>
    %cst_23 = arith.constant dense<0.000000e+00> : vector<8x128xf32>
    %27 = tpu.matmul %25, %26, %cst_23 {dimension_numbers = #tpu.dot_dimension_numbers<[1], [0], [0], [1], [0, 0, 1, 1], [], []>} : vector<8x128xf32>, vector<128x128xf32>, vector<8x128xf32> -> vector<8x128xf32>
    %c0_24 = arith.constant 0 : index
    %c0_25 = arith.constant 0 : index
    %28 = vector.load %arg7[%c0_24, %c0_25] : memref<1x128xf32, #tpu.memory_space<vmem>>, vector<1x128xf32>
    %29 = vector.broadcast %28 : vector<1x128xf32> to vector<8x128xf32>
    %30 = arith.addf %27, %29 : vector<8x128xf32>
    %c0_26 = arith.constant 0 : index
    %c0_27 = arith.constant 0 : index
    %31 = vector.load %arg8[%c0_26, %c0_27] : memref<8x128xf32, #tpu.memory_space<vmem>>, vector<8x128xf32>
    tpu.vector_store %arg8[%c0_26, %c0_27], %30 {strides = array<i32>} : memref<8x128xf32, #tpu.memory_space<vmem>>, vector<8x128xf32>,
    return
  }
  func.func @transform_0(%arg0: i32) -> (i32, i32) {
    %c0_i32 = arith.constant 0 : i32
    %c0_i32_0 = arith.constant 0 : i32
    return %arg0, %c0_i32 : i32, i32
  }
  func.func @transform_1(%arg0: i32) -> (i32, i32) {
    %c0_i32 = arith.constant 0 : i32
    %c0_i32_0 = arith.constant 0 : i32
    %c0_i32_1 = arith.constant 0 : i32
    return %c0_i32, %c0_i32_0 : i32, i32
  }
  func.func @transform_2(%arg0: i32) -> (i32, i32) {
    %c0_i32 = arith.constant 0 : i32
    %c0_i32_0 = arith.constant 0 : i32
    %c0_i32_1 = arith.constant 0 : i32
    return %c0_i32, %c0_i32_0 : i32, i32
  }
  func.func @transform_3(%arg0: i32) -> (i32, i32, i32) {
    %c0_i32 = arith.constant 0 : i32
    %c0_i32_0 = arith.constant 0 : i32
    %c0_i32_1 = arith.constant 0 : i32
    %c0_i32_2 = arith.constant 0 : i32
    return %c0_i32, %c0_i32_0, %c0_i32_1 : i32, i32, i32
  }
  func.func @transform_4(%arg0: i32) -> (i32, i32, i32) {
    %c0_i32 = arith.constant 0 : i32
    %c0_i32_0 = arith.constant 0 : i32
    %c0_i32_1 = arith.constant 0 : i32
    %c0_i32_2 = arith.constant 0 : i32
    return %c0_i32, %c0_i32_0, %c0_i32_1 : i32, i32, i32
  }
  func.func @transform_5(%arg0: i32) -> (i32, i32) {
    %c0_i32 = arith.constant 0 : i32
    %c0_i32_0 = arith.constant 0 : i32
    %c0_i32_1 = arith.constant 0 : i32
    return %c0_i32, %c0_i32_0 : i32, i32
  }
  func.func @transform_6(%arg0: i32) -> (i32, i32) {
    %c0_i32 = arith.constant 0 : i32
    %c0_i32_0 = arith.constant 0 : i32
    %c0_i32_1 = arith.constant 0 : i32
    return %c0_i32, %c0_i32_0 : i32, i32
  }
  func.func @transform_7(%arg0: i32) -> (i32, i32) {
    %c0_i32 = arith.constant 0 : i32
    %c0_i32_0 = arith.constant 0 : i32
    return %arg0, %c0_i32 : i32, i32
  }
}

</mosaic_0001>

<llo_original>
// kernel: mlp_forward.1
$region0: #{mlp_forward.1}
  #allocation0 [shape = 'u32[]', space=smem, size = 0x4, offset = 0x4, fixed_abs, tag = 'smem constant byte address 0x4 - core index']
  #allocation1 [shape = 'u32[144,128]{1,0:T(1,128)}', space=vmem, size = 0x12000, scoped, tag = 'internal scratch']
  %s0 = inlined_call_operand.vmem [shape: f32[8,128], index: 0, kind: input, shape index: {}]
  %s1 = inlined_call_operand.hbm [shape: f32[128,128], index: 1, kind: input, shape index: {}]
  %s2 = inlined_call_operand.vmem [shape: f32[1,128], index: 2, kind: input, shape index: {}]
  %s3 = inlined_call_operand.hbm [shape: f32[2,128,128], index: 3, kind: input, shape index: {}]
  %s4 = inlined_call_operand.vmem [shape: f32[2,1,128], index: 4, kind: input, shape index: {}]
  %s5 = inlined_call_operand.hbm [shape: f32[128,128], index: 5, kind: input, shape index: {}]
  %s6 = inlined_call_operand.vmem [shape: f32[1,128], index: 6, kind: input, shape index: {}]
  %s7 = inlined_call_operand.hbm [shape: f32[8,128], index: 7, kind: output, shape index: {}]
  %s8 = sld [smem:[#allocation0]]
  $region50: #{mlp_forward.1} parent=0
    _
  %s10 = ssub.s32 1, %s8
  %s11 = scalar_select 0, %s10, %s8
  $region1: #{mlp_forward.1} parent=0
    #allocation2 [shape = 'u8[65536]{0}', space=vmem, size = 0x10000, scoped, tag = 'input window, operand 1, single buffered']
    #allocation3 [shape = 's32[1]{0}', space=sflag, size = 0x4, scoped, tag = 'scoped memory for mlp_forward.1']
    #allocation4 [shape = 's32[1]{0}', space=sflag, size = 0x4, scoped, tag = 'scoped memory for mlp_forward.1']
    #allocation5 [shape = 'u8[131072]{0}', space=vmem, size = 0x20000, scoped, tag = 'input window, operand 3, single buffered']
    #allocation6 [shape = 's32[1]{0}', space=sflag, size = 0x4, scoped, tag = 'scoped memory for mlp_forward.1']
    #allocation7 [shape = 'u8[65536]{0}', space=vmem, size = 0x10000, scoped, tag = 'input window, operand 5, single buffered']
    #allocation8 [shape = 'u8[4096]{0}', space=vmem, size = 0x1000, scoped, tag = 'output window, operand 0, single buffered']
    %12 = vsyncpa [#allocation3], 0
    %13 = vsyncpa [#allocation6], 0
    %14 = vsyncpa [#allocation4], 0
    // Predicated region
    $region2: #{mlp_forward.1} parent=1 // pred_check
      _
    $region3: #{mlp_forward.1} parent=1 // pred_check_branch
      %16 = sbr.rel (0) target = $region5
    $region4: #{mlp_forward.1} parent=1 // pred_region
      _
    $region5: #{mlp_forward.1} parent=1 // pred_fallthru
      _
    // Predicated region
    $region6: #{mlp_forward.1} parent=1 // pred_check
      _
    $region7: #{mlp_forward.1} parent=1 // pred_check_branch
      %18 = sbr.rel (0) target = $region9
    $region8: #{mlp_forward.1} parent=1 // pred_region
      %s20 = ssub.s32 2048, 2048
      %21 = vsyncadd [#allocation3], %s20
      %s22 = sshll.u32 [#allocation2], 4
      %s23 = int_to_ptr.vmem [resolvable:$true] %s22
      %28 = dma.hbm_to_vmem [thread:$0]  %s1, 2048, %s23, [#allocation3], 128, 128, 8
    $region9: #{mlp_forward.1} parent=1 // pred_fallthru
      _
    // Predicated region
    $region10: #{mlp_forward.1} parent=1 // pred_check
      _
    $region11: #{mlp_forward.1} parent=1 // pred_check_branch
      %30 = sbr.rel (0) target = $region13
    $region12: #{mlp_forward.1} parent=1 // pred_region
      _
    $region13: #{mlp_forward.1} parent=1 // pred_fallthru
      _
    // Predicated region
    $region14: #{mlp_forward.1} parent=1 // pred_check
      _
    $region15: #{mlp_forward.1} parent=1 // pred_check_branch
      %32 = sbr.rel (0) target = $region17
    $region16: #{mlp_forward.1} parent=1 // pred_region
      %s34 = ssub.s32 4096, 4096
      %35 = vsyncadd [#allocation6], %s34
      %s36 = sshll.u32 [#allocation5], 4
      %s37 = int_to_ptr.vmem [resolvable:$true] %s36
      %42 = dma.hbm_to_vmem [thread:$0]  %s3, 4096, %s37, [#allocation6], 128, 128, 8
    $region17: #{mlp_forward.1} parent=1 // pred_fallthru
      _
    // Predicated region
    $region18: #{mlp_forward.1} parent=1 // pred_check
      _
    $region19: #{mlp_forward.1} parent=1 // pred_check_branch
      %44 = sbr.rel (0) target = $region21
    $region20: #{mlp_forward.1} parent=1 // pred_region
      _
    $region21: #{mlp_forward.1} parent=1 // pred_fallthru
      _
    // Predicated region
    $region22: #{mlp_forward.1} parent=1 // pred_check
      _
    $region23: #{mlp_forward.1} parent=1 // pred_check_branch
      %46 = sbr.rel (0) target = $region25
    $region24: #{mlp_forward.1} parent=1 // pred_region
      %s48 = ssub.s32 2048, 2048
      %49 = vsyncadd [#allocation6], %s48
      %s50 = sshll.u32 [#allocation7], 4
      %s51 = int_to_ptr.vmem [resolvable:$true] %s50
      %56 = dma.hbm_to_vmem [thread:$0]  %s5, 2048, %s51, [#allocation6], 128, 128, 8
    $region25: #{mlp_forward.1} parent=1 // pred_fallthru
      _
    // Predicated region
    $region26: #{mlp_forward.1} parent=1 // pred_check
      _
    $region27: #{mlp_forward.1} parent=1 // pred_check_branch
      %58 = sbr.rel (0) target = $region29
    $region28: #{mlp_forward.1} parent=1 // pred_region
      _
    $region29: #{mlp_forward.1} parent=1 // pred_fallthru
      _
    // Predicated region
    $region30: #{mlp_forward.1} parent=1 // pred_check
      _
    $region31: #{mlp_forward.1} parent=1 // pred_check_branch
      %60 = sbr.rel (0) target = $region33
    $region32: #{mlp_forward.1} parent=1 // pred_region
      %61 = dma.done [#allocation3], 2048
    $region33: #{mlp_forward.1} parent=1 // pred_fallthru
      _
    // Predicated region
    $region34: #{mlp_forward.1} parent=1 // pred_check
      _
    $region35: #{mlp_forward.1} parent=1 // pred_check_branch
      %63 = sbr.rel (0) target = $region37
    $region36: #{mlp_forward.1} parent=1 // pred_region
      %64 = dma.done [#allocation6], 4096
    $region37: #{mlp_forward.1} parent=1 // pred_fallthru
      _
    // Predicated region
    $region38: #{mlp_forward.1} parent=1 // pred_check
      _
    $region39: #{mlp_forward.1} parent=1 // pred_check_branch
      %66 = sbr.rel (0) target = $region41
    $region40: #{mlp_forward.1} parent=1 // pred_region
      %67 = dma.done [#allocation6], 2048
    $region41: #{mlp_forward.1} parent=1 // pred_fallthru
      _
    %v68 = vld [vmem:[%s0] sm:$0xff]
    %v69 = vld [vmem:[#allocation2] sm:$0xff]
    %v70 = vld [vmem:[#allocation2 + $0x8] sm:$0xff]
    %v71 = vld [vmem:[#allocation2 + $0x10] sm:$0xff]
    %v72 = vld [vmem:[#allocation2 + $0x18] sm:$0xff]
    %v73 = vld [vmem:[#allocation2 + $0x20] sm:$0xff]
    %v74 = vld [vmem:[#allocation2 + $0x28] sm:$0xff]
    %v75 = vld [vmem:[#allocation2 + $0x30] sm:$0xff]
    %v76 = vld [vmem:[#allocation2 + $0x38] sm:$0xff]
    %v77 = vld [vmem:[#allocation2 + $0x40] sm:$0xff]
    %v78 = vld [vmem:[#allocation2 + $0x48] sm:$0xff]
    %v79 = vld [vmem:[#allocation2 + $0x50] sm:$0xff]
    %v80 = vld [vmem:[#allocation2 + $0x58] sm:$0xff]
    %v81 = vld [vmem:[#allocation2 + $0x60] sm:$0xff]
    %v82 = vld [vmem:[#allocation2 + $0x68] sm:$0xff]
    %v83 = vld [vmem:[#allocation2 + $0x70] sm:$0xff]
    %v84 = vld [vmem:[#allocation2 + $0x78] sm:$0xff]
    %v85 = vld [vmem:[%s2] sm:$0x1]
    %v87 = vlaneseq
    %v88 = vshrl.u32 %v87, 7
    %v89 = vsub.s32 0, %v88
    %v90 = vrot.slane %v85, %v89
    %92 = vmatprep.subr.mxu0 0.0
    %93 = vmatpush1.msra.mxu0 %v69
    %94 = vmatprep.subr.mxu0 0.0
    %95 = vmatpush1.msra.mxu0 %v70
    %96 = vmatprep.subr.mxu0 0.0
    %97 = vmatpush1.msra.mxu0 %v71
    %98 = vmatprep.subr.mxu0 0.0
    %99 = vmatpush1.msra.mxu0 %v72
    %100 = vmatprep.subr.mxu0 0.0
    %101 = vmatpush1.msra.mxu0 %v73
    %102 = vmatprep.subr.mxu0 0.0
    %103 = vmatpush1.msra.mxu0 %v74
    %104 = vmatprep.subr.mxu0 0.0
    %105 = vmatpush1.msra.mxu0 %v75
    %106 = vmatprep.subr.mxu0 0.0
    %107 = vmatpush1.msra.mxu0 %v76
    %108 = vmatprep.subr.mxu0 0.0
    %109 = vmatpush1.msra.mxu0 %v77
    %110 = vmatprep.subr.mxu0 0.0
    %111 = vmatpush1.msra.mxu0 %v78
    %112 = vmatprep.subr.mxu0 0.0
    %113 = vmatpush1.msra.mxu0 %v79
    %114 = vmatprep.subr.mxu0 0.0
    %115 = vmatpush1.msra.mxu0 %v80
    %116 = vmatprep.subr.mxu0 0.0
    %117 = vmatpush1.msra.mxu0 %v81
    %118 = vmatprep.subr.mxu0 0.0
    %119 = vmatpush1.msra.mxu0 %v82
    %120 = vmatprep.subr.mxu0 0.0
    %121 = vmatpush1.msra.mxu0 %v83
    %122 = vmatprep.subr.mxu0 0.0
    %123 = vmatpush1.msra.mxu0 %v84
    %124 = vmatprep.subr.mxu0 0.0
    %125 = vmatpush1.msra.mxu0 0.0
    %126 = vmatprep.subr.mxu0 0.0
    %127 = vmatpush1.msra.mxu0 0.0
    %128 = vmatprep.subr.mxu0 0.0
    %129 = vmatpush1.msra.mxu0 0.0
    %130 = vmatprep.subr.mxu0 0.0
    %131 = vmatpush1.msra.mxu0 0.0
    %132 = vmatprep.subr.mxu0 0.0
    %133 = vmatpush1.msra.mxu0 0.0
    %134 = vmatprep.subr.mxu0 0.0
    %135 = vmatpush1.msra.mxu0 0.0
    %136 = vmatprep.subr.mxu0 0.0
    %137 = vmatpush1.msra.mxu0 0.0
    %138 = vmatprep.subr.mxu0 0.0
    %139 = vmatpush1.msra.mxu0 0.0
    %140 = vmatprep.subr.mxu0 0.0
    %141 = vmatpush1.msra.mxu0 0.0
    %142 = vmatprep.subr.mxu0 0.0
    %143 = vmatpush1.msra.mxu0 0.0
    %144 = vmatprep.subr.mxu0 0.0
    %145 = vmatpush1.msra.mxu0 0.0
    %146 = vmatprep.subr.mxu0 0.0
    %147 = vmatpush1.msra.mxu0 0.0
    %148 = vmatprep.subr.mxu0 0.0
    %149 = vmatpush1.msra.mxu0 0.0
    %150 = vmatprep.subr.mxu0 0.0
    %151 = vmatpush1.msra.mxu0 0.0
    %152 = vmatprep.subr.mxu0 0.0
    %153 = vmatpush1.msra.mxu0 0.0
    %154 = vmatprep.subr.mxu0 0.0
    %155 = vmatpush1.msra.mxu0 0.0
    %156 = vmatprep.mubr.f32.mxu0 0.0
    %157 = vmatmul.mubr.f32.gmra.mrb[0].mxu0 %v68
    %v158 = vpop.f32.mrb[0].mxu0
    %v159 = vadd.f32 %v90, %v158
    %v160 = vpop.f32.mrb[0].mxu0
    %161 = vdwg.mxu0
    %v162 = vmax.f32 %v159, 0.0
    %v163 = vld [vmem:[#allocation5] sm:$0xff]
    %v164 = vld [vmem:[#allocation5 + $0x8] sm:$0xff]
    %v165 = vld [vmem:[#allocation5 + $0x10] sm:$0xff]
    %v166 = vld [vmem:[#allocation5 + $0x18] sm:$0xff]
    %v167 = vld [vmem:[#allocation5 + $0x20] sm:$0xff]
    %v168 = vld [vmem:[#allocation5 + $0x28] sm:$0xff]
    %v169 = vld [vmem:[#allocation5 + $0x30] sm:$0xff]
    %v170 = vld [vmem:[#allocation5 + $0x38] sm:$0xff]
    %v171 = vld [vmem:[#allocation5 + $0x40] sm:$0xff]
    %v172 = vld [vmem:[#allocation5 + $0x48] sm:$0xff]
    %v173 = vld [vmem:[#allocation5 + $0x50] sm:$0xff]
    %v174 = vld [vmem:[#allocation5 + $0x58] sm:$0xff]
    %v175 = vld [vmem:[#allocation5 + $0x60] sm:$0xff]
    %v176 = vld [vmem:[#allocation5 + $0x68] sm:$0xff]
    %v177 = vld [vmem:[#allocation5 + $0x70] sm:$0xff]
    %v178 = vld [vmem:[#allocation5 + $0x78] sm:$0xff]
    %v179 = vld [vmem:[%s4] sm:$0x1]
    %v181 = vlaneseq
    %v182 = vshrl.u32 %v181, 7
    %v183 = vsub.s32 0, %v182
    %v184 = vrot.slane %v179, %v183
    %186 = vmatprep.subr.mxu0 0.0
    %187 = vmatpush1.msra.mxu0 %v163
    %188 = vmatprep.subr.mxu0 0.0
    %189 = vmatpush1.msra.mxu0 %v164
    %190 = vmatprep.subr.mxu0 0.0
    %191 = vmatpush1.msra.mxu0 %v165
    %192 = vmatprep.subr.mxu0 0.0
    %193 = vmatpush1.msra.mxu0 %v166
    %194 = vmatprep.subr.mxu0 0.0
    %195 = vmatpush1.msra.mxu0 %v167
    %196 = vmatprep.subr.mxu0 0.0
    %197 = vmatpush1.msra.mxu0 %v168
    %198 = vmatprep.subr.mxu0 0.0
    %199 = vmatpush1.msra.mxu0 %v169
    %200 = vmatprep.subr.mxu0 0.0
    %201 = vmatpush1.msra.mxu0 %v170
    %202 = vmatprep.subr.mxu0 0.0
    %203 = vmatpush1.msra.mxu0 %v171
    %204 = vmatprep.subr.mxu0 0.0
    %205 = vmatpush1.msra.mxu0 %v172
    %206 = vmatprep.subr.mxu0 0.0
    %207 = vmatpush1.msra.mxu0 %v173
    %208 = vmatprep.subr.mxu0 0.0
    %209 = vmatpush1.msra.mxu0 %v174
    %210 = vmatprep.subr.mxu0 0.0
    %211 = vmatpush1.msra.mxu0 %v175
    %212 = vmatprep.subr.mxu0 0.0
    %213 = vmatpush1.msra.mxu0 %v176
    %214 = vmatprep.subr.mxu0 0.0
    %215 = vmatpush1.msra.mxu0 %v177
    %216 = vmatprep.subr.mxu0 0.0
    %217 = vmatpush1.msra.mxu0 %v178
    %218 = vmatprep.subr.mxu0 0.0
    %219 = vmatpush1.msra.mxu0 0.0
    %220 = vmatprep.subr.mxu0 0.0
    %221 = vmatpush1.msra.mxu0 0.0
    %222 = vmatprep.subr.mxu0 0.0
    %223 = vmatpush1.msra.mxu0 0.0
    %224 = vmatprep.subr.mxu0 0.0
    %225 = vmatpush1.msra.mxu0 0.0
    %226 = vmatprep.subr.mxu0 0.0
    %227 = vmatpush1.msra.mxu0 0.0
    %228 = vmatprep.subr.mxu0 0.0
    %229 = vmatpush1.msra.mxu0 0.0
    %230 = vmatprep.subr.mxu0 0.0
    %231 = vmatpush1.msra.mxu0 0.0
    %232 = vmatprep.subr.mxu0 0.0
    %233 = vmatpush1.msra.mxu0 0.0
    %234 = vmatprep.subr.mxu0 0.0
    %235 = vmatpush1.msra.mxu0 0.0
    %236 = vmatprep.subr.mxu0 0.0
    %237 = vmatpush1.msra.mxu0 0.0
    %238 = vmatprep.subr.mxu0 0.0
    %239 = vmatpush1.msra.mxu0 0.0
    %240 = vmatprep.subr.mxu0 0.0
    %241 = vmatpush1.msra.mxu0 0.0
    %242 = vmatprep.subr.mxu0 0.0
    %243 = vmatpush1.msra.mxu0 0.0
    %244 = vmatprep.subr.mxu0 0.0
    %245 = vmatpush1.msra.mxu0 0.0
    %246 = vmatprep.subr.mxu0 0.0
    %247 = vmatpush1.msra.mxu0 0.0
    %248 = vmatprep.subr.mxu0 0.0
    %249 = vmatpush1.msra.mxu0 0.0
    %250 = vmatprep.mubr.f32.mxu0 0.0
    %251 = vmatmul.mubr.f32.gmra.mrb[0].mxu0 %v162
    %v252 = vpop.f32.mrb[0].mxu0
    %v253 = vadd.f32 %v184, %v252
    %v254 = vpop.f32.mrb[0].mxu0
    %255 = vdwg.mxu0
    %v256 = vmax.f32 %v253, 0.0
    %s257 = scalar_lea.vmem [#allocation5], 128
    %v258 = vld [vmem:[%s257] sm:$0xff]
    %v259 = vld [vmem:[%s257 + $0x8] sm:$0xff]
    %v260 = vld [vmem:[%s257 + $0x10] sm:$0xff]
    %v261 = vld [vmem:[%s257 + $0x18] sm:$0xff]
    %v262 = vld [vmem:[%s257 + $0x20] sm:$0xff]
    %v263 = vld [vmem:[%s257 + $0x28] sm:$0xff]
    %v264 = vld [vmem:[%s257 + $0x30] sm:$0xff]
    %v265 = vld [vmem:[%s257 + $0x38] sm:$0xff]
    %v266 = vld [vmem:[%s257 + $0x40] sm:$0xff]
    %v267 = vld [vmem:[%s257 + $0x48] sm:$0xff]
    %v268 = vld [vmem:[%s257 + $0x50] sm:$0xff]
    %v269 = vld [vmem:[%s257 + $0x58] sm:$0xff]
    %v270 = vld [vmem:[%s257 + $0x60] sm:$0xff]
    %v271 = vld [vmem:[%s257 + $0x68] sm:$0xff]
    %v272 = vld [vmem:[%s257 + $0x70] sm:$0xff]
    %v273 = vld [vmem:[%s257 + $0x78] sm:$0xff]
    %s274 = scalar_lea.vmem %s4, 1
    %v275 = vld [vmem:[%s274] sm:$0x1]
    %v277 = vlaneseq
    %v278 = vshrl.u32 %v277, 7
    %v279 = vsub.s32 0, %v278
    %v280 = vrot.slane %v275, %v279
    %282 = vmatprep.subr.mxu0 0.0
    %283 = vmatpush1.msra.mxu0 %v258
    %284 = vmatprep.subr.mxu0 0.0
    %285 = vmatpush1.msra.mxu0 %v259
    %286 = vmatprep.subr.mxu0 0.0
    %287 = vmatpush1.msra.mxu0 %v260
    %288 = vmatprep.subr.mxu0 0.0
    %289 = vmatpush1.msra.mxu0 %v261
    %290 = vmatprep.subr.mxu0 0.0
    %291 = vmatpush1.msra.mxu0 %v262
    %292 = vmatprep.subr.mxu0 0.0
    %293 = vmatpush1.msra.mxu0 %v263
    %294 = vmatprep.subr.mxu0 0.0
    %295 = vmatpush1.msra.mxu0 %v264
    %296 = vmatprep.subr.mxu0 0.0
    %297 = vmatpush1.msra.mxu0 %v265
    %298 = vmatprep.subr.mxu0 0.0
    %299 = vmatpush1.msra.mxu0 %v266
    %300 = vmatprep.subr.mxu0 0.0
    %301 = vmatpush1.msra.mxu0 %v267
    %302 = vmatprep.subr.mxu0 0.0
    %303 = vmatpush1.msra.mxu0 %v268
    %304 = vmatprep.subr.mxu0 0.0
    %305 = vmatpush1.msra.mxu0 %v269
    %306 = vmatprep.subr.mxu0 0.0
    %307 = vmatpush1.msra.mxu0 %v270
    %308 = vmatprep.subr.mxu0 0.0
    %309 = vmatpush1.msra.mxu0 %v271
    %310 = vmatprep.subr.mxu0 0.0
    %311 = vmatpush1.msra.mxu0 %v272
    %312 = vmatprep.subr.mxu0 0.0
    %313 = vmatpush1.msra.mxu0 %v273
    %314 = vmatprep.subr.mxu0 0.0
    %315 = vmatpush1.msra.mxu0 0.0
    %316 = vmatprep.subr.mxu0 0.0
    %317 = vmatpush1.msra.mxu0 0.0
    %318 = vmatprep.subr.mxu0 0.0
    %319 = vmatpush1.msra.mxu0 0.0
    %320 = vmatprep.subr.mxu0 0.0
    %321 = vmatpush1.msra.mxu0 0.0
    %322 = vmatprep.subr.mxu0 0.0
    %323 = vmatpush1.msra.mxu0 0.0
    %324 = vmatprep.subr.mxu0 0.0
    %325 = vmatpush1.msra.mxu0 0.0
    %326 = vmatprep.subr.mxu0 0.0
    %327 = vmatpush1.msra.mxu0 0.0
    %328 = vmatprep.subr.mxu0 0.0
    %329 = vmatpush1.msra.mxu0 0.0
    %330 = vmatprep.subr.mxu0 0.0
    %331 = vmatpush1.msra.mxu0 0.0
    %332 = vmatprep.subr.mxu0 0.0
    %333 = vmatpush1.msra.mxu0 0.0
    %334 = vmatprep.subr.mxu0 0.0
    %335 = vmatpush1.msra.mxu0 0.0
    %336 = vmatprep.subr.mxu0 0.0
    %337 = vmatpush1.msra.mxu0 0.0
    %338 = vmatprep.subr.mxu0 0.0
    %339 = vmatpush1.msra.mxu0 0.0
    %340 = vmatprep.subr.mxu0 0.0
    %341 = vmatpush1.msra.mxu0 0.0
    %342 = vmatprep.subr.mxu0 0.0
    %343 = vmatpush1.msra.mxu0 0.0
    %344 = vmatprep.subr.mxu0 0.0
    %345 = vmatpush1.msra.mxu0 0.0
    %346 = vmatprep.mubr.f32.mxu0 0.0
    %347 = vmatmul.mubr.f32.gmra.mrb[0].mxu0 %v256
    %v348 = vpop.f32.mrb[0].mxu0
    %v349 = vadd.f32 %v280, %v348
    %v350 = vpop.f32.mrb[0].mxu0
    %351 = vdwg.mxu0
    %v352 = vmax.f32 %v349, 0.0
    %v353 = vld [vmem:[#allocation7] sm:$0xff]
    %v354 = vld [vmem:[#allocation7 + $0x8] sm:$0xff]
    %v355 = vld [vmem:[#allocation7 + $0x10] sm:$0xff]
    %v356 = vld [vmem:[#allocation7 + $0x18] sm:$0xff]
    %v357 = vld [vmem:[#allocation7 + $0x20] sm:$0xff]
    %v358 = vld [vmem:[#allocation7 + $0x28] sm:$0xff]
    %v359 = vld [vmem:[#allocation7 + $0x30] sm:$0xff]
    %v360 = vld [vmem:[#allocation7 + $0x38] sm:$0xff]
    %v361 = vld [vmem:[#allocation7 + $0x40] sm:$0xff]
    %v362 = vld [vmem:[#allocation7 + $0x48] sm:$0xff]
    %v363 = vld [vmem:[#allocation7 + $0x50] sm:$0xff]
    %v364 = vld [vmem:[#allocation7 + $0x58] sm:$0xff]
    %v365 = vld [vmem:[#allocation7 + $0x60] sm:$0xff]
    %v366 = vld [vmem:[#allocation7 + $0x68] sm:$0xff]
    %v367 = vld [vmem:[#allocation7 + $0x70] sm:$0xff]
    %v368 = vld [vmem:[#allocation7 + $0x78] sm:$0xff]
    %v369 = vld [vmem:[%s6] sm:$0x1]
    %v371 = vlaneseq
    %v372 = vshrl.u32 %v371, 7
    %v373 = vsub.s32 0, %v372
    %v374 = vrot.slane %v369, %v373
    %376 = vmatprep.subr.mxu0 0.0
    %377 = vmatpush1.msra.mxu0 %v353
    %378 = vmatprep.subr.mxu0 0.0
    %379 = vmatpush1.msra.mxu0 %v354
    %380 = vmatprep.subr.mxu0 0.0
    %381 = vmatpush1.msra.mxu0 %v355
    %382 = vmatprep.subr.mxu0 0.0
    %383 = vmatpush1.msra.mxu0 %v356
    %384 = vmatprep.subr.mxu0 0.0
    %385 = vmatpush1.msra.mxu0 %v357
    %386 = vmatprep.subr.mxu0 0.0
    %387 = vmatpush1.msra.mxu0 %v358
    %388 = vmatprep.subr.mxu0 0.0
    %389 = vmatpush1.msra.mxu0 %v359
    %390 = vmatprep.subr.mxu0 0.0
    %391 = vmatpush1.msra.mxu0 %v360
    %392 = vmatprep.subr.mxu0 0.0
    %393 = vmatpush1.msra.mxu0 %v361
    %394 = vmatprep.subr.mxu0 0.0
    %395 = vmatpush1.msra.mxu0 %v362
    %396 = vmatprep.subr.mxu0 0.0
    %397 = vmatpush1.msra.mxu0 %v363
    %398 = vmatprep.subr.mxu0 0.0
    %399 = vmatpush1.msra.mxu0 %v364
    %400 = vmatprep.subr.mxu0 0.0
    %401 = vmatpush1.msra.mxu0 %v365
    %402 = vmatprep.subr.mxu0 0.0
    %403 = vmatpush1.msra.mxu0 %v366
    %404 = vmatprep.subr.mxu0 0.0
    %405 = vmatpush1.msra.mxu0 %v367
    %406 = vmatprep.subr.mxu0 0.0
    %407 = vmatpush1.msra.mxu0 %v368
    %408 = vmatprep.subr.mxu0 0.0
    %409 = vmatpush1.msra.mxu0 0.0
    %410 = vmatprep.subr.mxu0 0.0
    %411 = vmatpush1.msra.mxu0 0.0
    %412 = vmatprep.subr.mxu0 0.0
    %413 = vmatpush1.msra.mxu0 0.0
    %414 = vmatprep.subr.mxu0 0.0
    %415 = vmatpush1.msra.mxu0 0.0
    %416 = vmatprep.subr.mxu0 0.0
    %417 = vmatpush1.msra.mxu0 0.0
    %418 = vmatprep.subr.mxu0 0.0
    %419 = vmatpush1.msra.mxu0 0.0
    %420 = vmatprep.subr.mxu0 0.0
    %421 = vmatpush1.msra.mxu0 0.0
    %422 = vmatprep.subr.mxu0 0.0
    %423 = vmatpush1.msra.mxu0 0.0
    %424 = vmatprep.subr.mxu0 0.0
    %425 = vmatpush1.msra.mxu0 0.0
    %426 = vmatprep.subr.mxu0 0.0
    %427 = vmatpush1.msra.mxu0 0.0
    %428 = vmatprep.subr.mxu0 0.0
    %429 = vmatpush1.msra.mxu0 0.0
    %430 = vmatprep.subr.mxu0 0.0
    %431 = vmatpush1.msra.mxu0 0.0
    %432 = vmatprep.subr.mxu0 0.0
    %433 = vmatpush1.msra.mxu0 0.0
    %434 = vmatprep.subr.mxu0 0.0
    %435 = vmatpush1.msra.mxu0 0.0
    %436 = vmatprep.subr.mxu0 0.0
    %437 = vmatpush1.msra.mxu0 0.0
    %438 = vmatprep.subr.mxu0 0.0
    %439 = vmatpush1.msra.mxu0 0.0
    %440 = vmatprep.mubr.f32.mxu0 0.0
    %441 = vmatmul.mubr.f32.gmra.mrb[0].mxu0 %v352
    %v442 = vpop.f32.mrb[0].mxu0
    %v443 = vadd.f32 %v374, %v442
    %v444 = vpop.f32.mrb[0].mxu0
    %445 = vdwg.mxu0
    %446 = vst [vmem:[#allocation8] sm:$0xff] %v443
    // Predicated region
    $region42: #{mlp_forward.1} parent=1 // pred_check
      _
    $region43: #{mlp_forward.1} parent=1 // pred_check_branch
      %448 = sbr.rel (0) target = $region45
    $region44: #{mlp_forward.1} parent=1 // pred_region
      %s450 = ssub.s32 128, 128
      %451 = vsyncadd [#allocation4], %s450
      %s453 = sshll.u32 [#allocation8], 4
      %s454 = int_to_ptr.vmem [resolvable:$true] %s453
      %456 = dma.vmem_to_hbm [thread:$0]  %s454, 128, %s7, [#allocation4]
    $region45: #{mlp_forward.1} parent=1 // pred_fallthru
      _
    // Predicated region
    $region46: #{mlp_forward.1} parent=1 // pred_check
      _
    $region47: #{mlp_forward.1} parent=1 // pred_check_branch
      %458 = sbr.rel (0) target = $region49
    $region48: #{mlp_forward.1} parent=1 // pred_region
      %459 = dma.done [#allocation4], 128
    $region49: #{mlp_forward.1} parent=1 // pred_fallthru
      _
    %460 = vsyncpa [#allocation3], 1
    %461 = vsyncpa [#allocation6], 1
    %462 = vsyncpa [#allocation4], 1

</llo_original>
